<compile_context>
chip_gen: v7x
topology: tpu7x:2x2x1
jax: 0.10.0
libtpu: 0.0.40
codegen_flags: <defaults>
</compile_context>

<pallas_src>
import functools
import math

import jax
import jax.numpy as jnp
from jax.experimental import pallas as pl
from jax.experimental.pallas import tpu as pltpu


# ---------------------------------------------------------------------------
# Tile selection / VMEM budgeting
# ---------------------------------------------------------------------------

_TARGET_BLOCK_BYTES = 2 * 1024 * 1024   # 1-4 MiB blocks already saturate HBM BW
_MIN_GRID_STEPS = 8                     # >= 4 steps per TensorCore on v7x (2 TCs)


def _sublane_multiple(dtype):
    # f32 -> 8, bf16 -> 16, int8/fp8 -> 32 (sub-32-bit dtypes pack along sublanes).
    return max(8, 32 // jnp.dtype(dtype).itemsize)


def _pick_row_tile(rows, width, itemsize, *, sublane, max_tm=None):
    """Rows per block for a (rows, width) problem, ~2 MiB blocks, >=8 grid steps."""
    per_row = max(width * itemsize, 1)
    tm = _TARGET_BLOCK_BYTES // per_row
    tm = min(tm, max(1, -(-rows // _MIN_GRID_STEPS)))   # keep >= _MIN_GRID_STEPS steps
    if max_tm is not None:
        tm = min(tm, max_tm)
    tm = max(sublane, (tm // sublane) * sublane)
    if tm >= rows:
        tm = rows                                        # full extent is always legal
    return int(tm)


def _pick_lane_tile(n, hw, c, itemsize):
    """Spatial (lane) tile for the channels_first kernel operating on (C, hw) slabs."""
    if hw <= 128:
        # TODO(synk): hw < 128 lanes (e.g. ConvNeXt 7x7 stage) forces masked partial
        # stores; a lane-dense regrouped view would need an HBM transpose, which
        # costs more than the masking for this memory-bound op.
        return int(hw)
    per_col = max(c * itemsize, 1)
    t = _TARGET_BLOCK_BYTES // per_col
    want_per_batch = max(1, -(-_MIN_GRID_STEPS // max(n, 1)))
    t = min(t, max(1, -(-hw // want_per_batch)))
    t = max(128, (t // 128) * 128)                       # lane-dense block width
    if t >= hw:
        t = hw                                           # full extent also legal
    return int(t)


def _vmem_limit_bytes(tile_elems, itemsize, *, f32_copies, extra=0):
    """Right-sized scoped-VMEM request: buffers + f32 working set + slack, <= 32 MiB."""
    need = 4 * tile_elems * itemsize        # in + out blocks, double-buffered
    need += f32_copies * tile_elems * 4     # in-kernel f32 temporaries
    need += extra + (6 << 20)               # small params / indicators + compiler slack
    # 32 MiB is safe on every generation (v7x: 64 MiB per-TC physical VMEM).
    return int(min(max(need, 16 << 20), 32 << 20))


# ---------------------------------------------------------------------------
# Kernels
# ---------------------------------------------------------------------------

def _ln_lane_kernel(x_ref, w_ref, b_ref, o_ref, *, eps):
    # x_ref: (TM, C) with the normalized axis C on lanes; w_ref/b_ref: (1, C).
    x = x_ref[...].astype(jnp.float32)
    u = jnp.mean(x, axis=-1, keepdims=True)
    xc = x - u
    var = jnp.mean(xc * xc, axis=-1, keepdims=True)
    a = jax.lax.rsqrt(var + eps)                       # EUP slot -> effectively free
    o_ref[...] = (xc * a * w_ref[...] + b_ref[...]).astype(o_ref.dtype)


def _ln_sublane_kernel(x_ref, w_ref, b_ref, o_ref, *, eps):
    # NCHW-native: x_ref (C, T) -- channels on sublanes, spatial on lanes.
    x = x_ref[...].astype(jnp.float32)
    u = jnp.mean(x, axis=0, keepdims=True)             # XLU sublane reduce
    xc = x - u
    var = jnp.mean(xc * xc, axis=0, keepdims=True)
    a = jax.lax.rsqrt(var + eps)
    o_ref[...] = (xc * a * w_ref[...] + b_ref[...]).astype(o_ref.dtype)


def _ln_grouped_kernel(x_ref, w_ref, b_ref, seg_ref, segt_ref, o_ref, *, eps, inv_c):
    # Lane-dense small-C path: each (TM, G*C) row holds G independent groups of C
    # channels.  Group reductions / broadcasts use 0/1 indicator matmuls on the
    # otherwise-idle MXU.  Two-pass variance (no E[x^2]-mean^2 cancellation).
    x = x_ref[...].astype(jnp.float32)                 # (TM, G*C)
    seg = seg_ref[...]                                 # (G*C, G)
    segt = segt_ref[...]                               # (G, G*C)
    hi = jax.lax.Precision.HIGHEST
    u = jnp.dot(x, seg, preferred_element_type=jnp.float32, precision=hi) * inv_c      # (TM, G)
    u_full = jnp.dot(u, segt, preferred_element_type=jnp.float32, precision=hi)        # (TM, G*C)
    xc = x - u_full
    var = jnp.dot(xc * xc, seg, preferred_element_type=jnp.float32, precision=hi) * inv_c
    a = jax.lax.rsqrt(var + eps)                                                        # (TM, G)
    a_full = jnp.dot(a, segt, preferred_element_type=jnp.float32, precision=hi)         # (TM, G*C)
    o_ref[...] = (xc * a_full * w_ref[...] + b_ref[...]).astype(o_ref.dtype)


# ---------------------------------------------------------------------------
# pallas_call wrappers
# ---------------------------------------------------------------------------

def _ln_lane_call(x2d, w_row, b_row, eps):
    rows, c = x2d.shape
    itemsize = jnp.dtype(x2d.dtype).itemsize
    tm = _pick_row_tile(rows, c, itemsize, sublane=_sublane_multiple(x2d.dtype))
    limit = _vmem_limit_bytes(tm * c, itemsize, f32_copies=6)
    cost = pl.CostEstimate(flops=8 * rows * c, transcendentals=rows,
                           bytes_accessed=2 * rows * c * itemsize + 8 * c)
    return pl.pallas_call(
        functools.partial(_ln_lane_kernel, eps=eps),
        out_shape=jax.ShapeDtypeStruct((rows, c), x2d.dtype),
        grid_spec=pltpu.PrefetchScalarGridSpec(
            num_scalar_prefetch=0,
            grid=(pl.cdiv(rows, tm),),
            in_specs=[
                pl.BlockSpec((tm, c), lambda i: (i, 0)),
                pl.BlockSpec((1, c), lambda i: (0, 0)),
                pl.BlockSpec((1, c), lambda i: (0, 0)),
            ],
            out_specs=pl.BlockSpec((tm, c), lambda i: (i, 0)),
        ),
        compiler_params=pltpu.CompilerParams(
            dimension_semantics=("parallel",),
            vmem_limit_bytes=limit,
        ),
        cost_estimate=cost,
    )(x2d, w_row, b_row)


def _ln_grouped_call(x2d, grouped, eps):
    rows, c = x2d.shape
    g, gw = grouped["g"], grouped["gw"]
    rows_g = rows // g
    xg = x2d.reshape(rows_g, gw)                 # free: contiguous view, no data movement
    itemsize = jnp.dtype(x2d.dtype).itemsize
    # Cap tm at 512: this kernel materializes several full-width f32 temporaries.
    tm = _pick_row_tile(rows_g, gw, itemsize,
                        sublane=_sublane_multiple(x2d.dtype), max_tm=512)
    seg_bytes = gw * g * 4
    limit = _vmem_limit_bytes(tm * gw, itemsize, f32_copies=8, extra=4 * seg_bytes)
    cost = pl.CostEstimate(flops=8 * rows_g * gw * g + 8 * rows * c,
                           transcendentals=rows,
                           bytes_accessed=2 * rows * c * itemsize + 8 * gw + 8 * gw * g)
    yg = pl.pallas_call(
        functools.partial(_ln_grouped_kernel, eps=eps, inv_c=1.0 / c),
        out_shape=jax.ShapeDtypeStruct((rows_g, gw), x2d.dtype),
        grid_spec=pltpu.PrefetchScalarGridSpec(
            num_scalar_prefetch=0,
            grid=(pl.cdiv(rows_g, tm),),
            in_specs=[
                pl.BlockSpec((tm, gw), lambda i: (i, 0)),
                pl.BlockSpec((1, gw), lambda i: (0, 0)),
                pl.BlockSpec((1, gw), lambda i: (0, 0)),
                pl.BlockSpec((gw, g), lambda i: (0, 0)),
                pl.BlockSpec((g, gw), lambda i: (0, 0)),
            ],
            out_specs=pl.BlockSpec((tm, gw), lambda i: (i, 0)),
        ),
        compiler_params=pltpu.CompilerParams(
            dimension_semantics=("parallel",),
            vmem_limit_bytes=limit,
        ),
        cost_estimate=cost,
    )(xg, grouped["w"], grouped["b"], grouped["seg"], grouped["segt"])
    return yg.reshape(rows, c)


def _ln_sublane_call(x3, w_col, b_col, eps):
    n, c, hw = x3.shape
    itemsize = jnp.dtype(x3.dtype).itemsize
    t = _pick_lane_tile(n, hw, c, itemsize)
    limit = _vmem_limit_bytes(c * t, itemsize, f32_copies=6)
    cost = pl.CostEstimate(flops=8 * n * c * hw, transcendentals=n * hw,
                           bytes_accessed=2 * n * c * hw * itemsize + 8 * c)
    return pl.pallas_call(
        functools.partial(_ln_sublane_kernel, eps=eps),
        out_shape=jax.ShapeDtypeStruct((n, c, hw), x3.dtype),
        grid_spec=pltpu.PrefetchScalarGridSpec(
            num_scalar_prefetch=0,
            grid=(n, pl.cdiv(hw, t)),
            in_specs=[
                pl.BlockSpec((None, c, t), lambda i, j: (i, 0, j)),
                pl.BlockSpec((c, 1), lambda i, j: (0, 0)),
                pl.BlockSpec((c, 1), lambda i, j: (0, 0)),
            ],
            out_specs=pl.BlockSpec((None, c, t), lambda i, j: (i, 0, j)),
        ),
        compiler_params=pltpu.CompilerParams(
            dimension_semantics=("parallel", "parallel"),
            vmem_limit_bytes=limit,
        ),
        cost_estimate=cost,
    )(x3, w_col, b_col)


# ---------------------------------------------------------------------------
# Dispatch + module
# ---------------------------------------------------------------------------

def _layernorm_channels_last(x, params, eps):
    c = params["c"]
    assert x.shape[-1] == c
    rows = x.size // c
    x2d = x.reshape(rows, c)
    grouped = params.get("grouped")
    if grouped is not None and rows % grouped["g"] == 0:
        y2d = _ln_grouped_call(x2d, grouped, eps)
    else:
        # TODO(synk): for C % 128 != 0 shapes not covered by the grouped lane-dense
        # view, pad C to a multiple of 128 with masked weight/bias instead of this
        # lane-sparse fallback.
        y2d = _ln_lane_call(x2d, params["w_row"], params["b_row"], eps)
    return y2d.reshape(x.shape)


def _layernorm_channels_first(x, params, eps):
    c = params["c"]
    assert x.ndim >= 3 and x.shape[1] == c
    n = x.shape[0]
    hw = x.size // (n * c)
    x3 = x.reshape(n, c, hw)             # free reshape; NO transposes
    y3 = _ln_sublane_call(x3, params["w_col"], params["b_col"], eps)
    return y3.reshape(x.shape)


class LayerNorm:
    """JAX/Pallas port of the ConvNeXt LayerNorm (channels_last / channels_first)."""

    def __init__(self, normalized_shape, eps=1e-6, data_format="channels_last"):
        if data_format not in ("channels_last", "channels_first"):
            raise NotImplementedError
        self.C = int(normalized_shape)
        self.eps = float(eps)
        self.data_format = data_format
        # Deterministic init, same as nn.Parameter(torch.ones/zeros(...)).
        self.weight = jnp.ones((self.C,), dtype=jnp.float32)
        self.bias = jnp.zeros((self.C,), dtype=jnp.float32)
        # Parameter layouts built once (not per forward call).  Rebuild via
        # refresh_params() if weight/bias are replaced after construction.
        self._params = self._prepare_params()

    def refresh_params(self):
        self._params = self._prepare_params()

    def _prepare_params(self):
        c = self.C
        w = self.weight.astype(jnp.float32)
        b = self.bias.astype(jnp.float32)
        params = {
            "c": c,
            "w_row": w.reshape(1, c), "b_row": b.reshape(1, c),
            "w_col": w.reshape(c, 1), "b_col": b.reshape(c, 1),
        }
        if c % 128 != 0:
            g = math.lcm(c, 128) // c
            gw = g * c
            if gw <= 2048:
                gid = jnp.arange(gw, dtype=jnp.int32) // c
                seg = (gid[:, None] ==
                       jnp.arange(g, dtype=jnp.int32)[None, :]).astype(jnp.float32)
                params["grouped"] = {
                    "g": g, "gw": gw,
                    "w": jnp.tile(w, g).reshape(1, gw),
                    "b": jnp.tile(b, g).reshape(1, gw),
                    "seg": seg, "segt": seg.T,
                }
        return params

    def __call__(self, x):
        if self.data_format == "channels_last":
            return _layernorm_channels_last(x, self._params, self.eps)
        return _layernorm_channels_first(x, self._params, self.eps)


# ---------------------------------------------------------------------------
# References + self-test
# ---------------------------------------------------------------------------

def _reference_channels_first(x, weight, bias, eps):
    xf = x.astype(jnp.float32)
    u = jnp.mean(xf, axis=1, keepdims=True)
    s = jnp.mean((xf - u) ** 2, axis=1, keepdims=True)
    xn = (xf - u) / jnp.sqrt(s + eps)
    return weight[None, :, None, None] * xn + bias[None, :, None, None]


def _reference_channels_last(x, weight, bias, eps):
    xf = x.astype(jnp.float32)
    u = jnp.mean(xf, axis=-1, keepdims=True)
    s = jnp.mean((xf - u) ** 2, axis=-1, keepdims=True)
    return (xf - u) / jnp.sqrt(s + eps) * weight + bias


if __name__ == "__main__":
    key = jax.random.PRNGKey(0)
    k1, k2, k3, k4, k5 = jax.random.split(key, 5)

    # channels_first: NCHW, as used around the convs in ConvNeXt (NCHW-native kernel).
    x_cf = jax.random.normal(k1, (2, 4, 16, 16), dtype=jnp.float32)
    ln_cf = LayerNorm(4, eps=1e-6, data_format="channels_first")
    y_cf = jax.block_until_ready(ln_cf(x_cf))
    ref_cf = _reference_channels_first(x_cf, ln_cf.weight, ln_cf.bias, ln_cf.eps)
    assert y_cf.shape == x_cf.shape and y_cf.dtype == x_cf.dtype
    assert float(jnp.max(jnp.abs(y_cf - ref_cf))) < 1e-4

    # channels_first with hw not a multiple of 128 (ConvNeXt 14x14 stage) --
    # exercises the lane-dense 128-wide tiles with a clipped trailing block.
    x_cf2 = jax.random.normal(k2, (2, 4, 14, 14), dtype=jnp.float32)
    ln_cf2 = LayerNorm(4, eps=1e-6, data_format="channels_first")
    y_cf2 = jax.block_until_ready(ln_cf2(x_cf2))
    ref_cf2 = _reference_channels_first(x_cf2, ln_cf2.weight, ln_cf2.bias, ln_cf2.eps)
    assert y_cf2.shape == x_cf2.shape and y_cf2.dtype == x_cf2.dtype
    assert float(jnp.max(jnp.abs(y_cf2 - ref_cf2))) < 1e-4

    # channels_last, small C (exercises the lane-dense grouped kernel, two-pass variance).
    x_cl = jax.random.normal(k3, (2, 16, 16, 4), dtype=jnp.float32) + 3.0
    ln_cl = LayerNorm(4, eps=1e-6, data_format="channels_last")
    y_cl = jax.block_until_ready(ln_cl(x_cl))
    ref_cl = _reference_channels_last(x_cl, ln_cl.weight, ln_cl.bias, ln_cl.eps)
    assert y_cl.shape == x_cl.shape and y_cl.dtype == x_cl.dtype
    assert float(jnp.max(jnp.abs(y_cl - ref_cl))) < 1e-4

    # channels_last, lane-aligned C (exercises the plain lane-axis kernel).
    x_cl2 = jax.random.normal(k4, (2, 4, 4, 128), dtype=jnp.float32)
    ln_cl2 = LayerNorm(128, eps=1e-6, data_format="channels_last")
    y_cl2 = jax.block_until_ready(ln_cl2(x_cl2))
    ref_cl2 = _reference_channels_last(x_cl2, ln_cl2.weight, ln_cl2.bias, ln_cl2.eps)
    assert y_cl2.shape == x_cl2.shape and y_cl2.dtype == x_cl2.dtype
    assert float(jnp.max(jnp.abs(y_cl2 - ref_cl2))) < 1e-4

    # channels_last, bf16 input (exercises the 16-row sublane-packing tile rounding).
    x_bf = jax.random.normal(k5, (2, 4, 4, 128), dtype=jnp.bfloat16)
    ln_bf = LayerNorm(128, eps=1e-6, data_format="channels_last")
    y_bf = jax.block_until_ready(ln_bf(x_bf))
    ref_bf = _reference_channels_last(x_bf, ln_bf.weight, ln_bf.bias, ln_bf.eps)
    assert y_bf.shape == x_bf.shape and y_bf.dtype == x_bf.dtype
    assert float(jnp.max(jnp.abs(y_bf.astype(jnp.float32) - ref_bf))) < 1e-1

    print("KERNEL_OK")
</pallas_src>

<mosaic_0001>
module attributes {stable_mosaic.version = 11 : i64} {
  func.func @_ln_sublane_kernel(%arg0: i32, %arg1: i32, %arg2: memref<1x4x128xf32, #tpu.memory_space<vmem>>, %arg3: memref<4x1xf32, #tpu.memory_space<vmem>>, %arg4: memref<4x1xf32, #tpu.memory_space<vmem>>, %arg5: memref<1x4x128xf32, #tpu.memory_space<vmem>>) attributes {dimension_semantics = [#tpu.dimension_semantics<parallel>, #tpu.dimension_semantics<parallel>], iteration_bounds = array<i64: 2, 2>, scalar_prefetch = 0 : i64, scratch_operands = 0 : i64, tpu.core_type = #tpu.core_type<tc>, window_params = [{transform_indices = @transform_0, window_bounds = array<i64: 1, 4, 128>}, {pipeline_mode = #tpu.pipeline_mode<synchronous>, transform_indices = @transform_1, window_bounds = array<i64: 4, 1>}, {pipeline_mode = #tpu.pipeline_mode<synchronous>, transform_indices = @transform_2, window_bounds = array<i64: 4, 1>}, {transform_indices = @transform_3, window_bounds = array<i64: 1, 4, 128>}]} {
    %c0 = arith.constant 0 : index
    %c0_0 = arith.constant 0 : index
    %c0_1 = arith.constant 0 : index
    %0 = vector.load %arg2[%c0, %c0_0, %c0_1] : memref<1x4x128xf32, #tpu.memory_space<vmem>>, vector<1x4x128xf32>
    %1 = vector.shape_cast %0 : vector<1x4x128xf32> to vector<4x128xf32>
    %cst = arith.constant dense<0.000000e+00> : vector<128xf32>
    %2 = vector.multi_reduction <add>, %1, %cst [0] : vector<4x128xf32> to vector<128xf32>
    %3 = vector.shape_cast %2 : vector<128xf32> to vector<1x128xf32>
    %cst_2 = arith.constant 4.000000e+00 : f32
    %4 = vector.broadcast %cst_2 : f32 to vector<1x128xf32>
    %5 = arith.divf %3, %4 : vector<1x128xf32>
    %6 = vector.broadcast %5 : vector<1x128xf32> to vector<4x128xf32>
    %7 = arith.subf %1, %6 : vector<4x128xf32>
    %8 = arith.mulf %7, %7 : vector<4x128xf32>
    %cst_3 = arith.constant dense<0.000000e+00> : vector<128xf32>
    %9 = vector.multi_reduction <add>, %8, %cst_3 [0] : vector<4x128xf32> to vector<128xf32>
    %10 = vector.shape_cast %9 : vector<128xf32> to vector<1x128xf32>
    %cst_4 = arith.constant 4.000000e+00 : f32
    %11 = vector.broadcast %cst_4 : f32 to vector<1x128xf32>
    %12 = arith.divf %10, %11 : vector<1x128xf32>
    %cst_5 = arith.constant 9.99999997E-7 : f32
    %13 = vector.broadcast %cst_5 : f32 to vector<1x128xf32>
    %14 = arith.addf %12, %13 : vector<1x128xf32>
    %15 = math.rsqrt %14 : vector<1x128xf32>
    %16 = vector.broadcast %15 : vector<1x128xf32> to vector<4x128xf32>
    %17 = arith.mulf %7, %16 : vector<4x128xf32>
    %c0_6 = arith.constant 0 : index
    %c0_7 = arith.constant 0 : index
    %18 = vector.load %arg3[%c0_6, %c0_7] : memref<4x1xf32, #tpu.memory_space<vmem>>, vector<4x1xf32>
    %19 = vector.broadcast %18 : vector<4x1xf32> to vector<4x128xf32>
    %20 = arith.mulf %17, %19 : vector<4x128xf32>
    %c0_8 = arith.constant 0 : index
    %c0_9 = arith.constant 0 : index
    %21 = vector.load %arg4[%c0_8, %c0_9] : memref<4x1xf32, #tpu.memory_space<vmem>>, vector<4x1xf32>
    %22 = vector.broadcast %21 : vector<4x1xf32> to vector<4x128xf32>
    %23 = arith.addf %20, %22 : vector<4x128xf32>
    %c0_10 = arith.constant 0 : index
    %c0_11 = arith.constant 0 : index
    %c0_12 = arith.constant 0 : index
    %24 = vector.load %arg5[%c0_10, %c0_11, %c0_12] : memref<1x4x128xf32, #tpu.memory_space<vmem>>, vector<1x4x128xf32>
    %25 = vector.shape_cast %24 : vector<1x4x128xf32> to vector<4x128xf32>
    %26 = vector.shape_cast %23 : vector<4x128xf32> to vector<1x4x128xf32>
    tpu.vector_store %arg5[%c0_10, %c0_11, %c0_12], %26 {strides = array<i32>} : memref<1x4x128xf32, #tpu.memory_space<vmem>>, vector<1x4x128xf32>,
    return
  }
  func.func @transform_0(%arg0: i32, %arg1: i32) -> (i32, i32, i32) {
    %c0_i32 = arith.constant 0 : i32
    %c0_i32_0 = arith.constant 0 : i32
    return %arg0, %c0_i32, %arg1 : i32, i32, i32
  }
  func.func @transform_1(%arg0: i32, %arg1: i32) -> (i32, i32) {
    %c0_i32 = arith.constant 0 : i32
    %c0_i32_0 = arith.constant 0 : i32
    %c0_i32_1 = arith.constant 0 : i32
    return %c0_i32, %c0_i32_0 : i32, i32
  }
  func.func @transform_2(%arg0: i32, %arg1: i32) -> (i32, i32) {
    %c0_i32 = arith.constant 0 : i32
    %c0_i32_0 = arith.constant 0 : i32
    %c0_i32_1 = arith.constant 0 : i32
    return %c0_i32, %c0_i32_0 : i32, i32
  }
  func.func @transform_3(%arg0: i32, %arg1: i32) -> (i32, i32, i32) {
    %c0_i32 = arith.constant 0 : i32
    %c0_i32_0 = arith.constant 0 : i32
    return %arg0, %c0_i32, %arg1 : i32, i32, i32
  }
}

</mosaic_0001>

<llo_original>
// kernel: tpu_custom_call.1
$region0: #{tpu_custom_call.1}
  #allocation0 [shape = 'u32[]', space=smem, size = 0x4, offset = 0x4, fixed_abs, tag = 'smem constant byte address 0x4 - core index']
  #allocation1 [shape = 'u32[144,128]{1,0:T(1,128)}', space=vmem, size = 0x12000, scoped, tag = 'internal scratch']
  %s0 = inlined_call_operand.hbm [shape: f32[2,4,256], index: 0, kind: input, shape index: {}]
  %s1 = inlined_call_operand.vmem [shape: f32[4,1], index: 1, kind: input, shape index: {}]
  %s2 = inlined_call_operand.vmem [shape: f32[4,1], index: 2, kind: input, shape index: {}]
  %s3 = inlined_call_operand.hbm [shape: f32[2,4,256], index: 3, kind: output, shape index: {}]
  %s4 = sld [smem:[#allocation0]]
  $region49: #{tpu_custom_call.1} parent=0
    _
  %s6 = ssub.s32 1, %s4
  %s7 = scalar_select 0, %s6, %s4
  $region1: #{tpu_custom_call.1} parent=0
    #allocation2 [shape = 'u8[4096]{0}', space=vmem, size = 0x1000, scoped, tag = 'input window, operand 0']
    #allocation3 [shape = 's32[2]{0}', space=sflag, size = 0x8, scoped, tag = 'scoped memory for tpu_custom_call.1']
    #allocation4 [shape = 's32[2]{0}', space=sflag, size = 0x8, scoped, tag = 'scoped memory for tpu_custom_call.1']
    #allocation5 [shape = 'u8[4096]{0}', space=vmem, size = 0x1000, scoped, tag = 'output window, operand 0']
    %8 = vsyncpa [#allocation3], 0
    %s9 = scalar_lea.sflag [#allocation3], 1
    %10 = vsyncpa %s9, 0
    %11 = vsyncpa [#allocation4], 0
    %s12 = scalar_lea.sflag [#allocation4], 1
    %13 = vsyncpa %s12, 0
    loop: start=0, step=1, limit=6
    $region2: #{tpu_custom_call.1} parent=1 // loop_pre_header
      _
    $region3: #{tpu_custom_call.1} parent=1 // loop_header
      %s15 = sphi 0, %s19
      %p16 = scmp.ge.s32.totalorder %s15, 6
      %s22 = sphi 0, %s34
      %s23 = sphi 0, %s30
      %s24 = sphi 0, %s22
      %s25 = sphi 0, %s23
      %s26 = sphi 0, %s24
      %s27 = sphi 0, %s25
      %s39 = sphi 0, %s41
      %s42 = sphi 0, %s39
      %s43 = sphi 0, %s42
      %s59 = sphi 0, %s43
      %s63 = sphi 0, %s63
      %s65 = sphi 0, %s63
      %s66 = sphi 0, %s65
      %s80 = sphi 0, %s66
      %s84 = sphi 0, %s84
      %s86 = sphi 0, %s84
      %s87 = sphi 0, %s86
      %s101 = sphi 0, %s87
      %s109 = sphi 0, %s111
      %s112 = sphi 0, %s109
      %s113 = sphi 0, %s112
      %s129 = sphi 0, %s113
    $region4: #{tpu_custom_call.1} parent=1 // loop_header_branch
      %18 = sbr.rel (%p16) target = $region8
    $region5: #{tpu_custom_call.1} parent=1 // loop_body
      %s20 = ssub.s32 %s15, 1
      %s21 = ssub.s32 %s15, 2
      %s28 = sadd.s32 1, %s23
      %p29 = scmp.ge.s32.totalorder %s28, 2
      %s30 = scalar_select %p29, 0, %s28
      %s31 = sadd.s32 1, %s22
      %s32 = scalar_select %p29, %s31, %s22
      %p33 = scmp.ge.s32.totalorder %s32, 2
      %s34 = scalar_select %p33, 0, %s32
      %s35 = ssub.s32 %s22, %s34
      %s36 = ssub.s32 %s23, %s30
      %s37 = sor.u32 %s35, %s36
      %p38 = scmp.eq.s32.totalorder %s37, 0
      %s40 = sadd.s32 %s39, 1
      %s41 = scalar_select %p38, %s39, %s40
      %p44 = pneg %p38
      %p45 = scmp.eq.s32.totalorder %s15, 3
      %p46 = por %p44, %p45
      %p47 = scmp.ne.s32.totalorder %s39, %s42
      %p48 = scmp.eq.s32.totalorder %s15, 0
      %p49 = por %p47, %p48
      %p50 = scmp.ne.s32.totalorder %s39, %s42
      %p51 = scmp.eq.s32.totalorder %s20, 3
      %p52 = por %p50, %p51
      %p53 = scmp.ne.s32.totalorder %s42, %s43
      %p54 = scmp.eq.s32.totalorder %s20, 0
      %p55 = por %p53, %p54
      %p56 = scmp.ne.s32.totalorder %s42, %s43
      %p57 = scmp.eq.s32.totalorder %s21, 3
      %p58 = por %p56, %p57
      %p60 = scmp.ne.s32.totalorder %s43, %s59
      %p61 = scmp.eq.s32.totalorder %s21, 0
      %p62 = por %p60, %p61
      %s64 = sadd.s32 %s63, 1
      %p67 = scmp.eq.s32.totalorder %s15, 3
      %p68 = scmp.ne.s32.totalorder %s63, %s65
      %p69 = scmp.eq.s32.totalorder %s15, 0
      %p70 = por %p68, %p69
      %p71 = scmp.ne.s32.totalorder %s63, %s65
      %p72 = scmp.eq.s32.totalorder %s20, 3
      %p73 = por %p71, %p72
      %p74 = scmp.ne.s32.totalorder %s65, %s66
      %p75 = scmp.eq.s32.totalorder %s20, 0
      %p76 = por %p74, %p75
      %p77 = scmp.ne.s32.totalorder %s65, %s66
      %p78 = scmp.eq.s32.totalorder %s21, 3
      %p79 = por %p77, %p78
      %p81 = scmp.ne.s32.totalorder %s66, %s80
      %p82 = scmp.eq.s32.totalorder %s21, 0
      %p83 = por %p81, %p82
      %s85 = sadd.s32 %s84, 1
      %p88 = scmp.eq.s32.totalorder %s15, 3
      %p89 = scmp.ne.s32.totalorder %s84, %s86
      %p90 = scmp.eq.s32.totalorder %s15, 0
      %p91 = por %p89, %p90
      %p92 = scmp.ne.s32.totalorder %s84, %s86
      %p93 = scmp.eq.s32.totalorder %s20, 3
      %p94 = por %p92, %p93
      %p95 = scmp.ne.s32.totalorder %s86, %s87
      %p96 = scmp.eq.s32.totalorder %s20, 0
      %p97 = por %p95, %p96
      %p98 = scmp.ne.s32.totalorder %s86, %s87
      %p99 = scmp.eq.s32.totalorder %s21, 3
      %p100 = por %p98, %p99
      %p102 = scmp.ne.s32.totalorder %s87, %s101
      %p103 = scmp.eq.s32.totalorder %s21, 0
      %p104 = por %p102, %p103
      %s105 = ssub.s32 %s22, %s34
      %s106 = ssub.s32 %s23, %s30
      %s107 = sor.u32 %s105, %s106
      %p108 = scmp.eq.s32.totalorder %s107, 0
      %s110 = sadd.s32 %s109, 1
      %s111 = scalar_select %p108, %s109, %s110
      %p114 = pneg %p108
      %p115 = scmp.eq.s32.totalorder %s15, 3
      %p116 = por %p114, %p115
      %p117 = scmp.ne.s32.totalorder %s109, %s112
      %p118 = scmp.eq.s32.totalorder %s15, 0
      %p119 = por %p117, %p118
      %p120 = scmp.ne.s32.totalorder %s109, %s112
      %p121 = scmp.eq.s32.totalorder %s20, 3
      %p122 = por %p120, %p121
      %p123 = scmp.ne.s32.totalorder %s112, %s113
      %p124 = scmp.eq.s32.totalorder %s20, 0
      %p125 = por %p123, %p124
      %p126 = scmp.ne.s32.totalorder %s112, %s113
      %p127 = scmp.eq.s32.totalorder %s21, 3
      %p128 = por %p126, %p127
      %p130 = scmp.ne.s32.totalorder %s113, %s129
      %p131 = scmp.eq.s32.totalorder %s21, 0
      %p132 = por %p130, %p131
      %p133 = scmp.le.s32.totalorder 1, %s15
      %p134 = scmp.lt.s32.totalorder %s15, 5
      %p135 = pnand %p133, %p134
      %p136 = pneg %p135
      // Predicated region
      $region9: #{tpu_custom_call.1} parent=5 // pred_check
        _
      $region10: #{tpu_custom_call.1} parent=5 // pred_check_branch
        %138 = sbr.rel (%p135) target = $region12
      $region11: #{tpu_custom_call.1} parent=5 // pred_region
        %s139 = ssub.s32 %s15, 1
        // Predicated region
        $region13: #{tpu_custom_call.1} parent=11 // pred_check
          %p140 = pneg %p76
        $region14: #{tpu_custom_call.1} parent=11 // pred_check_branch
          %142 = sbr.rel (%p140) target = $region16
        $region15: #{tpu_custom_call.1} parent=11 // pred_region
          _
        $region16: #{tpu_custom_call.1} parent=11 // pred_fallthru
          _
        // Predicated region
        $region17: #{tpu_custom_call.1} parent=11 // pred_check
          %p143 = pneg %p97
        $region18: #{tpu_custom_call.1} parent=11 // pred_check_branch
          %145 = sbr.rel (%p143) target = $region20
        $region19: #{tpu_custom_call.1} parent=11 // pred_region
          _
        $region20: #{tpu_custom_call.1} parent=11 // pred_fallthru
          _
      $region12: #{tpu_custom_call.1} parent=5 // pred_fallthru
        _
      %p146 = scmp.lt.s32.totalorder %s15, 4
      // Predicated region
      $region21: #{tpu_custom_call.1} parent=5 // pred_check
        %p147 = pneg %p146
      $region22: #{tpu_custom_call.1} parent=5 // pred_check_branch
        %149 = sbr.rel (%p147) target = $region24
      $region23: #{tpu_custom_call.1} parent=5 // pred_region
        // Predicated region
        $region25: #{tpu_custom_call.1} parent=23 // pred_check
          %p150 = pneg %p49
        $region26: #{tpu_custom_call.1} parent=23 // pred_check_branch
          %152 = sbr.rel (%p150) target = $region28
        $region27: #{tpu_custom_call.1} parent=23 // pred_region
          %s153 = sand.u32 %s39, 1
          %s154 = scalar_lea.sflag [#allocation3], %s153
          %s155 = sand.u32 %s39, 1
          %s156 = smul.addr %s155, 4
          %s157 = scalar_lea.vmem [#allocation2], %s156
          %s159 = ssub.s32 64, 64
          %160 = vsyncadd %s154, %s159
          %s161 = smul.addr %s22, 2
          %s162 = sadd.s32 %s23, %s161
          %s163 = smul.addr %s162, 64
          %s164 = scalar_lea.hbm %s0, %s163
          %s166 = sshll.u32 %s157, 4
          %s167 = int_to_ptr.vmem [resolvable:$true] %s166
          %169 = dma.hbm_to_vmem [thread:$0]  %s164, 64, %s167, %s154
        $region28: #{tpu_custom_call.1} parent=23 // pred_fallthru
          _
      $region24: #{tpu_custom_call.1} parent=5 // pred_fallthru
        _
      %p170 = scmp.le.s32.totalorder 1, %s15
      %p171 = scmp.lt.s32.totalorder %s15, 5
      %p172 = pnand %p170, %p171
      %p173 = pneg %p172
      // Predicated region
      $region29: #{tpu_custom_call.1} parent=5 // pred_check
        _
      $region30: #{tpu_custom_call.1} parent=5 // pred_check_branch
        %175 = sbr.rel (%p172) target = $region32
      $region31: #{tpu_custom_call.1} parent=5 // pred_region
        %s176 = ssub.s32 %s15, 1
        %s177 = sand.u32 %s42, 1
        %s178 = scalar_lea.sflag [#allocation3], %s177
        %s179 = sand.u32 %s42, 1
        %s180 = smul.addr %s179, 4
        %s181 = scalar_lea.vmem [#allocation2], %s180
        // Predicated region
        $region33: #{tpu_custom_call.1} parent=31 // pred_check
          %p182 = pneg %p55
        $region34: #{tpu_custom_call.1} parent=31 // pred_check_branch
          %184 = sbr.rel (%p182) target = $region36
        $region35: #{tpu_custom_call.1} parent=31 // pred_region
          %185 = dma.done %s178, 64
        $region36: #{tpu_custom_call.1} parent=31 // pred_fallthru
          _
        %s186 = sand.u32 %s42, 1
        %s187 = scalar_lea.sflag [#allocation3], %s186
        %s188 = sand.u32 %s42, 1
        %s189 = smul.addr %s188, 4
        %s190 = scalar_lea.vmem [#allocation2], %s189
        %p191 = pneg %p55
        %p192 = pneg %p52
        %p193 = pneg %p76
        %p194 = pneg %p73
        %p195 = pneg %p97
        %p196 = pneg %p94
        %p197 = pneg %p125
        %p198 = pneg %p122
        %s199 = sand.u32 %s112, 1
        %s200 = scalar_lea.sflag [#allocation4], %s199
        %s201 = sand.u32 %s112, 1
        %s202 = smul.addr %s201, 4
        %s203 = scalar_lea.vmem [#allocation5], %s202
        %v204 = vld [vmem:[%s181] sm:$0xf]
        %vm205 = vcmask 1043456
        %v206 = vsel %vm205, %v204, 0.0
        %v207 = vrot.slane %v206, 4
        %v208 = vadd.f32 %v206, %v207
        %v209 = vrot.slane %v208, 2
        %v210 = vadd.f32 %v208, %v209
        %v211 = vrot.slane %v210, 1
        %v212 = vadd.f32 %v210, %v211
        %v213 = vrcp.pop 4.0
        %v214 = vmul.f32 %v212, %v213
        %v215 = vsub.f32 %v204, %v214
        %v216 = vmul.f32 %v215, %v215
        %v217 = vsel %vm205, %v216, 0.0
        %v218 = vrot.slane %v217, 4
        %v219 = vadd.f32 %v217, %v218
        %v220 = vrot.slane %v219, 2
        %v221 = vadd.f32 %v219, %v220
        %v222 = vrot.slane %v221, 1
        %v223 = vadd.f32 %v221, %v222
        %v224 = vmul.f32 %v223, %v213
        %v225 = vadd.f32 %v224, 1e-06
        %v226 = vrsqrt.pop %v225
        %v227 = vmul.f32 %v215, %v226
        %v228 = vld [vmem:[%s1] sm:$0xf]
        %230 = vset.pattern.permute.xlu0 0
        %231 = vperm.xlu0 %230, %v228
        %v232 = vpop.permute.xlu0 %231
        %v234 = vmul.f32 %v227, %v232
        %v235 = vld [vmem:[%s2] sm:$0xf]
        %237 = vset.pattern.permute.xlu0 0
        %238 = vperm.xlu0 %237, %v235
        %v239 = vpop.permute.xlu0 %238
        %v241 = vadd.f32 %v234, %v239
        %242 = vst [vmem:[%s203] sm:$0xf] %v241
        %s243 = sand.u32 %s112, 1
        %s244 = scalar_lea.sflag [#allocation4], %s243
        %s245 = sand.u32 %s112, 1
        %s246 = smul.addr %s245, 4
        %s247 = scalar_lea.vmem [#allocation5], %s246
        // Predicated region
        $region37: #{tpu_custom_call.1} parent=31 // pred_check
          %p248 = pneg %p122
        $region38: #{tpu_custom_call.1} parent=31 // pred_check_branch
          %250 = sbr.rel (%p248) target = $region40
        $region39: #{tpu_custom_call.1} parent=31 // pred_region
          %s252 = ssub.s32 64, 64
          %253 = vsyncadd %s244, %s252
          %s254 = smul.addr %s24, 2
          %s255 = sadd.s32 %s25, %s254
          %s256 = smul.addr %s255, 64
          %s257 = scalar_lea.hbm %s3, %s256
          %s259 = sshll.u32 %s247, 4
          %s260 = int_to_ptr.vmem [resolvable:$true] %s259
          %262 = dma.vmem_to_hbm [thread:$0]  %s260, 64, %s257, %s244
        $region40: #{tpu_custom_call.1} parent=31 // pred_fallthru
          _
      $region32: #{tpu_custom_call.1} parent=5 // pred_fallthru
        _
      %p263 = scmp.le.s32.totalorder 2, %s15
      // Predicated region
      $region41: #{tpu_custom_call.1} parent=5 // pred_check
        %p264 = pneg %p263
      $region42: #{tpu_custom_call.1} parent=5 // pred_check_branch
        %266 = sbr.rel (%p264) target = $region44
      $region43: #{tpu_custom_call.1} parent=5 // pred_region
        %s267 = ssub.s32 %s15, 2
        // Predicated region
        $region45: #{tpu_custom_call.1} parent=43 // pred_check
          %p268 = pneg %p128
        $region46: #{tpu_custom_call.1} parent=43 // pred_check_branch
          %270 = sbr.rel (%p268) target = $region48
        $region47: #{tpu_custom_call.1} parent=43 // pred_region
          %s271 = sand.u32 %s113, 1
          %s272 = scalar_lea.sflag [#allocation4], %s271
          %s273 = sand.u32 %s113, 1
          %s274 = smul.addr %s273, 4
          %s275 = scalar_lea.vmem [#allocation5], %s274
          %276 = dma.done %s272, 64
        $region48: #{tpu_custom_call.1} parent=43 // pred_fallthru
          _
      $region44: #{tpu_custom_call.1} parent=5 // pred_fallthru
        _
    $region6: #{tpu_custom_call.1} parent=1 // loop_footer
      %s19 = sadd.s32 1, %s15
    $region7: #{tpu_custom_call.1} parent=1 // loop_footer_branch
      %14 = sbr.rel target = $region3
    $region8: #{tpu_custom_call.1} parent=1 // loop_exit
      _
    %277 = vsyncpa [#allocation3], 1
    %s278 = scalar_lea.sflag [#allocation3], 1
    %279 = vsyncpa %s278, 1
    %280 = vsyncpa [#allocation4], 1
    %s281 = scalar_lea.sflag [#allocation4], 1
    %282 = vsyncpa %s281, 1

</llo_original>
